<compile_context>
chip_gen: v7x
topology: tpu7x:2x2x1
jax: 0.10.0
libtpu: 0.0.40
codegen_flags: <defaults>
</compile_context>

<pallas_src>
import functools

import jax
import jax.numpy as jnp
import numpy as np
from jax.experimental import pallas as pl
from jax.experimental.pallas import tpu as pltpu


# Model hyper-parameters implied by the module spec.
CIN = 4
COUT = 8
NUM_CLASSES = 10
KH = KW = 3
KFEAT = KH * KW * CIN                      # 36 im2col features

# Lane-friendly padded widths (zero padding; sliced off outside the kernel).
COUT_PAD = 128
NCLS_PAD = 128

TB_CAP = 64                                # max batch elements per grid step


# ----------------------------- Pallas kernel --------------------------------
def _fused_kernel(patches_ref, conv_w_ref, conv_b_ref, head_w_ref, head_b_ref,
                  out_ref, *, tb, hw):
    """TB batch elements per grid step.

    patches_ref : [TB, H*W, KFEAT]      im2col patches, feature order (kh, kw, cin)
    conv_w_ref  : [KFEAT, COUT_PAD]     conv weight (same feature order)
    conv_b_ref  : [1, COUT_PAD]
    head_w_ref  : [COUT_PAD, NCLS_PAD]  head weight, pre-scaled by 1/(H*W)
    head_b_ref  : [1, NCLS_PAD]
    out_ref     : [TB, NCLS_PAD]
    """
    # Merge (TB, H*W) -> rows; last dim untouched so this is layout-preserving.
    p = patches_ref[...].reshape(tb * hw, KFEAT)

    # Conv as one MXU matmul with f32 accumulation, then bias + ReLU on the VPU.
    h = jnp.dot(p, conv_w_ref[...],
                preferred_element_type=jnp.float32)            # [TB*HW, COUT_PAD]
    h = jnp.maximum(h + conv_b_ref[...], 0.0)

    # Global average pool: per-element sublane-sum (1/(H*W) folded into head_w).
    pooled = jnp.sum(h.reshape(tb, hw, COUT_PAD), axis=1)      # [TB, COUT_PAD]

    # Head: Linear(COUT -> NUM_CLASSES) on lane-dense padded slabs.
    logits = jnp.dot(pooled, head_w_ref[...],
                     preferred_element_type=jnp.float32) + head_b_ref[...]
    out_ref[...] = logits.astype(out_ref.dtype)                # [TB, NCLS_PAD]


# ------------------------------- helpers -------------------------------------
def _choose_tb(batch):
    """Batch block size: <= TB_CAP, and keep >= 2 grid steps when possible."""
    if batch <= 1:
        return 1
    tb = min(batch, TB_CAP)
    tb = min(tb, pl.cdiv(batch, 2))        # >= 2 parallel steps (v7x: 2 TCs)
    return max(tb, 1)


def _vmem_limit_bytes(tb, hw):
    dbytes = 4
    weights = (KFEAT * COUT_PAD + COUT_PAD + COUT_PAD * NCLS_PAD + NCLS_PAD) * dbytes
    in_blk = tb * hw * KFEAT * dbytes
    out_blk = tb * NCLS_PAD * dbytes
    h_tmp = tb * hw * COUT_PAD * dbytes
    need = 2 * weights + 2 * in_blk + 2 * out_blk + 2 * h_tmp  # dbl-buffer + temps
    # Generous 2x headroom; stay within v7x's 32 MiB scoped default.
    return int(max(4 << 20, min(2 * need, 32 << 20)))


# ------------------------------- wrapper -------------------------------------
def my_model_forward(img, params):
    """img: [B, CIN, H, W] (NCHW, PyTorch layout). Returns [B, NUM_CLASSES]."""
    B, cin, H, W = img.shape
    assert cin == CIN
    HW = H * W

    # ---- host-side layout prep (XLA): im2col patches, lane-dense last dim ----
    x_nhwc = jnp.transpose(img, (0, 2, 3, 1)).astype(jnp.float32)      # [B,H,W,CIN]
    x_pad = jnp.pad(x_nhwc, ((0, 0), (1, 1), (1, 1), (0, 0)))          # [B,H+2,W+2,CIN]
    cols = []
    for kh in range(KH):
        for kw in range(KW):
            cols.append(x_pad[:, kh:kh + H, kw:kw + W, :])             # [B,H,W,CIN]
    patches = jnp.concatenate(cols, axis=-1).reshape(B, HW, KFEAT)     # [B,HW,36]

    # ---- batch blocking ----
    tb = _choose_tb(B)
    grid_steps = pl.cdiv(B, tb)
    b_pad = grid_steps * tb
    if b_pad != B:
        patches = jnp.pad(patches, ((0, b_pad - B), (0, 0), (0, 0)))

    # ---- weights: pad feature lanes to 128; fold 1/(H*W) into head_w ----
    w = jnp.transpose(params["conv_w"].astype(jnp.float32), (2, 3, 1, 0))   # [KH,KW,CIN,COUT]
    w = w.reshape(KFEAT, COUT)
    conv_w = jnp.pad(w, ((0, 0), (0, COUT_PAD - COUT)))
    conv_b = jnp.pad(params["conv_b"].astype(jnp.float32).reshape(1, COUT),
                     ((0, 0), (0, COUT_PAD - COUT)))
    head_w = jnp.pad(params["head_w"].astype(jnp.float32).T * (1.0 / HW),   # [COUT, NCLS]
                     ((0, COUT_PAD - COUT), (0, NCLS_PAD - NUM_CLASSES)))
    head_b = jnp.pad(params["head_b"].astype(jnp.float32).reshape(1, NUM_CLASSES),
                     ((0, 0), (0, NCLS_PAD - NUM_CLASSES)))

    kernel = functools.partial(_fused_kernel, tb=tb, hw=HW)

    # Advisory cost estimate (unpadded real work).
    flops = B * (2 * HW * KFEAT * COUT        # conv matmul
                 + 2 * HW * COUT              # bias + relu
                 + HW * COUT                  # pool reduction
                 + 2 * COUT * NUM_CLASSES)    # head matmul
    bytes_accessed = 4 * (patches.size + conv_w.size + conv_b.size
                          + head_w.size + head_b.size + b_pad * NCLS_PAD)

    out = pl.pallas_call(
        kernel,
        out_shape=jax.ShapeDtypeStruct((grid_steps, tb, NCLS_PAD), jnp.float32),
        grid=(grid_steps,),
        in_specs=[
            pl.BlockSpec((tb, HW, KFEAT), lambda g: (g, 0, 0)),
            pl.BlockSpec((KFEAT, COUT_PAD), lambda g: (0, 0)),
            pl.BlockSpec((1, COUT_PAD), lambda g: (0, 0)),
            pl.BlockSpec((COUT_PAD, NCLS_PAD), lambda g: (0, 0)),
            pl.BlockSpec((1, NCLS_PAD), lambda g: (0, 0)),
        ],
        out_specs=pl.BlockSpec((None, tb, NCLS_PAD), lambda g: (g, 0, 0)),
        compiler_params=pltpu.CompilerParams(
            dimension_semantics=("parallel",),
            vmem_limit_bytes=_vmem_limit_bytes(tb, HW),
        ),
        cost_estimate=pl.CostEstimate(flops=flops, transcendentals=0,
                                      bytes_accessed=bytes_accessed),
    )(patches, conv_w, conv_b, head_w, head_b)

    out = out.reshape(b_pad, NCLS_PAD)
    return out[:B, :NUM_CLASSES]                                        # [B, 10]


# ------------------------------ reference ------------------------------------
def reference_forward(img, params):
    """Plain-JAX reference matching the PyTorch module semantics."""
    conv_out = jax.lax.conv_general_dilated(
        img, params["conv_w"], window_strides=(1, 1), padding="SAME",
        dimension_numbers=("NCHW", "OIHW", "NCHW"),
        precision=jax.lax.Precision.HIGHEST)
    conv_out = jnp.maximum(conv_out + params["conv_b"][None, :, None, None], 0.0)
    pooled = conv_out.mean(axis=(2, 3))                                 # [B, COUT]
    return jnp.dot(pooled, params["head_w"].T,
                   precision=jax.lax.Precision.HIGHEST) + params["head_b"]


# --------------------------------- main --------------------------------------
if __name__ == "__main__":
    B, H, W = 2, 16, 16

    key = jax.random.PRNGKey(0)
    k_img, k_cw, k_cb, k_hw, k_hb = jax.random.split(key, 5)

    img = jax.random.normal(k_img, (B, CIN, H, W), dtype=jnp.float32)
    params = {
        "conv_w": jax.random.normal(k_cw, (COUT, CIN, KH, KW), dtype=jnp.float32) * 0.1,
        "conv_b": jax.random.normal(k_cb, (COUT,), dtype=jnp.float32) * 0.1,
        "head_w": jax.random.normal(k_hw, (NUM_CLASSES, COUT), dtype=jnp.float32) * 0.1,
        "head_b": jax.random.normal(k_hb, (NUM_CLASSES,), dtype=jnp.float32) * 0.1,
    }

    out = jax.block_until_ready(my_model_forward(img, params))
    ref = jax.block_until_ready(reference_forward(img, params))

    assert out.shape == (B, NUM_CLASSES)
    np.testing.assert_allclose(np.asarray(out), np.asarray(ref), rtol=1e-4, atol=1e-4)
    print("KERNEL_OK")
</pallas_src>

<mosaic_0001>
module attributes {stable_mosaic.version = 11 : i64} {
  func.func @_fused_kernel(%arg0: i32, %arg1: memref<1x256x36xf32, #tpu.memory_space<vmem>>, %arg2: memref<36x128xf32, #tpu.memory_space<vmem>>, %arg3: memref<1x128xf32, #tpu.memory_space<vmem>>, %arg4: memref<128x128xf32, #tpu.memory_space<vmem>>, %arg5: memref<1x128xf32, #tpu.memory_space<vmem>>, %arg6: memref<1x1x128xf32, #tpu.memory_space<vmem>>) attributes {dimension_semantics = [#tpu.dimension_semantics<parallel>], iteration_bounds = array<i64: 2>, scalar_prefetch = 0 : i64, scratch_operands = 0 : i64, tpu.core_type = #tpu.core_type<tc>, window_params = [{transform_indices = @transform_0, window_bounds = array<i64: 1, 256, 36>}, {pipeline_mode = #tpu.pipeline_mode<synchronous>, transform_indices = @transform_1, window_bounds = array<i64: 36, 128>}, {pipeline_mode = #tpu.pipeline_mode<synchronous>, transform_indices = @transform_2, window_bounds = array<i64: 1, 128>}, {pipeline_mode = #tpu.pipeline_mode<synchronous>, transform_indices = @transform_3, window_bounds = array<i64: 128, 128>}, {pipeline_mode = #tpu.pipeline_mode<synchronous>, transform_indices = @transform_4, window_bounds = array<i64: 1, 128>}, {transform_indices = @transform_5, window_bounds = array<i64: 1, 1, 128>}]} {
    %c0 = arith.constant 0 : index
    %c0_0 = arith.constant 0 : index
    %c0_1 = arith.constant 0 : index
    %0 = vector.load %arg1[%c0, %c0_0, %c0_1] : memref<1x256x36xf32, #tpu.memory_space<vmem>>, vector<1x256x36xf32>
    %1 = vector.shape_cast %0 : vector<1x256x36xf32> to vector<256x36xf32>
    %c0_2 = arith.constant 0 : index
    %c0_3 = arith.constant 0 : index
    %2 = vector.load %arg2[%c0_2, %c0_3] : memref<36x128xf32, #tpu.memory_space<vmem>>, vector<36x128xf32>
    %cst = arith.constant dense<0.000000e+00> : vector<256x128xf32>
    %3 = tpu.matmul %1, %2, %cst {dimension_numbers = #tpu.dot_dimension_numbers<[1], [0], [0], [1], [0, 0, 1, 1], [], []>} : vector<256x36xf32>, vector<36x128xf32>, vector<256x128xf32> -> vector<256x128xf32>
    %c0_4 = arith.constant 0 : index
    %c0_5 = arith.constant 0 : index
    %4 = vector.load %arg3[%c0_4, %c0_5] : memref<1x128xf32, #tpu.memory_space<vmem>>, vector<1x128xf32>
    %5 = vector.broadcast %4 : vector<1x128xf32> to vector<256x128xf32>
    %6 = arith.addf %3, %5 : vector<256x128xf32>
    %cst_6 = arith.constant 0.000000e+00 : f32
    %7 = vector.broadcast %cst_6 : f32 to vector<256x128xf32>
    %8 = arith.maximumf %6, %7 : vector<256x128xf32>
    %9 = vector.shape_cast %8 : vector<256x128xf32> to vector<1x256x128xf32>
    %cst_7 = arith.constant dense<0.000000e+00> : vector<1x128xf32>
    %10 = vector.multi_reduction <add>, %9, %cst_7 [1] : vector<1x256x128xf32> to vector<1x128xf32>
    %c0_8 = arith.constant 0 : index
    %c0_9 = arith.constant 0 : index
    %11 = vector.load %arg4[%c0_8, %c0_9] : memref<128x128xf32, #tpu.memory_space<vmem>>, vector<128x128xf32>
    %cst_10 = arith.constant dense<0.000000e+00> : vector<1x128xf32>
    %12 = tpu.matmul %10, %11, %cst_10 {dimension_numbers = #tpu.dot_dimension_numbers<[1], [0], [0], [1], [0, 0, 1, 1], [], []>} : vector<1x128xf32>, vector<128x128xf32>, vector<1x128xf32> -> vector<1x128xf32>
    %c0_11 = arith.constant 0 : index
    %c0_12 = arith.constant 0 : index
    %13 = vector.load %arg5[%c0_11, %c0_12] : memref<1x128xf32, #tpu.memory_space<vmem>>, vector<1x128xf32>
    %14 = arith.addf %12, %13 : vector<1x128xf32>
    %c0_13 = arith.constant 0 : index
    %c0_14 = arith.constant 0 : index
    %c0_15 = arith.constant 0 : index
    %15 = vector.load %arg6[%c0_13, %c0_14, %c0_15] : memref<1x1x128xf32, #tpu.memory_space<vmem>>, vector<1x1x128xf32>
    %16 = vector.shape_cast %15 : vector<1x1x128xf32> to vector<1x128xf32>
    %17 = vector.shape_cast %14 : vector<1x128xf32> to vector<1x1x128xf32>
    tpu.vector_store %arg6[%c0_13, %c0_14, %c0_15], %17 {strides = array<i32>} : memref<1x1x128xf32, #tpu.memory_space<vmem>>, vector<1x1x128xf32>,
    return
  }
  func.func @transform_0(%arg0: i32) -> (i32, i32, i32) {
    %c0_i32 = arith.constant 0 : i32
    %c0_i32_0 = arith.constant 0 : i32
    %c0_i32_1 = arith.constant 0 : i32
    return %arg0, %c0_i32, %c0_i32_0 : i32, i32, i32
  }
  func.func @transform_1(%arg0: i32) -> (i32, i32) {
    %c0_i32 = arith.constant 0 : i32
    %c0_i32_0 = arith.constant 0 : i32
    %c0_i32_1 = arith.constant 0 : i32
    return %c0_i32, %c0_i32_0 : i32, i32
  }
  func.func @transform_2(%arg0: i32) -> (i32, i32) {
    %c0_i32 = arith.constant 0 : i32
    %c0_i32_0 = arith.constant 0 : i32
    %c0_i32_1 = arith.constant 0 : i32
    return %c0_i32, %c0_i32_0 : i32, i32
  }
  func.func @transform_3(%arg0: i32) -> (i32, i32) {
    %c0_i32 = arith.constant 0 : i32
    %c0_i32_0 = arith.constant 0 : i32
    %c0_i32_1 = arith.constant 0 : i32
    return %c0_i32, %c0_i32_0 : i32, i32
  }
  func.func @transform_4(%arg0: i32) -> (i32, i32) {
    %c0_i32 = arith.constant 0 : i32
    %c0_i32_0 = arith.constant 0 : i32
    %c0_i32_1 = arith.constant 0 : i32
    return %c0_i32, %c0_i32_0 : i32, i32
  }
  func.func @transform_5(%arg0: i32) -> (i32, i32, i32) {
    %c0_i32 = arith.constant 0 : i32
    %c0_i32_0 = arith.constant 0 : i32
    %c0_i32_1 = arith.constant 0 : i32
    return %arg0, %c0_i32, %c0_i32_0 : i32, i32, i32
  }
}

</mosaic_0001>

<llo_original>
// kernel: tpu_custom_call.1
$region0: #{tpu_custom_call.1}
  #allocation0 [shape = 'u32[]', space=smem, size = 0x4, offset = 0x4, fixed_abs, tag = 'smem constant byte address 0x4 - core index']
  #allocation1 [shape = 'u32[144,128]{1,0:T(1,128)}', space=vmem, size = 0x12000, scoped, tag = 'internal scratch']
  %s0 = inlined_call_operand.vmem [shape: f32[2,256,36], index: 0, kind: input, shape index: {}]
  %s1 = inlined_call_operand.vmem [shape: f32[36,128], index: 1, kind: input, shape index: {}]
  %s2 = inlined_call_operand.vmem [shape: f32[1,128], index: 2, kind: input, shape index: {}]
  %s3 = inlined_call_operand.vmem [shape: f32[128,128], index: 3, kind: input, shape index: {}]
  %s4 = inlined_call_operand.vmem [shape: f32[1,128], index: 4, kind: input, shape index: {}]
  %s5 = inlined_call_operand.hbm [shape: f32[2,1,128], index: 5, kind: output, shape index: {}]
  %s6 = sld [smem:[#allocation0]]
  $region53: #{tpu_custom_call.1} parent=0
    _
  %s8 = ssub.s32 1, %s6
  %s9 = scalar_select 0, %s8, %s6
  $region1: #{tpu_custom_call.1} parent=0
    #allocation2 [shape = 'u8[1024]{0}', space=vmem, size = 0x400, scoped, tag = 'output window, operand 0']
    #allocation3 [shape = 's32[2]{0}', space=sflag, size = 0x8, scoped, tag = 'scoped memory for tpu_custom_call.1']
    %10 = vsyncpa [#allocation3], 0
    %s11 = scalar_lea.sflag [#allocation3], 1
    %12 = vsyncpa %s11, 0
    loop: start=0, step=1, limit=4
    $region2: #{tpu_custom_call.1} parent=1 // loop_pre_header
      _
    $region3: #{tpu_custom_call.1} parent=1 // loop_header
      %s14 = sphi 0, %s18
      %p15 = scmp.ge.s32.totalorder %s14, 4
      %s24 = sphi 0, %s26
      %s27 = sphi 0, %s24
      %s28 = sphi 0, %s27
      %s44 = sphi 0, %s28
      %s48 = sphi 0, %s48
      %s50 = sphi 0, %s48
      %s51 = sphi 0, %s50
      %s65 = sphi 0, %s51
      %s69 = sphi 0, %s69
      %s71 = sphi 0, %s69
      %s72 = sphi 0, %s71
      %s86 = sphi 0, %s72
      %s90 = sphi 0, %s90
      %s92 = sphi 0, %s90
      %s93 = sphi 0, %s92
      %s107 = sphi 0, %s93
      %s111 = sphi 0, %s111
      %s113 = sphi 0, %s111
      %s114 = sphi 0, %s113
      %s128 = sphi 0, %s114
      %s134 = sphi 0, %s136
      %s137 = sphi 0, %s134
      %s138 = sphi 0, %s137
      %s154 = sphi 0, %s138
    $region4: #{tpu_custom_call.1} parent=1 // loop_header_branch
      %17 = sbr.rel (%p15) target = $region8
    $region5: #{tpu_custom_call.1} parent=1 // loop_body
      %s19 = ssub.s32 %s14, 1
      %s20 = ssub.s32 %s14, 2
      %s21 = sadd.s32 %s14, 1
      %s22 = ssub.s32 %s14, %s21
      %p23 = scmp.eq.s32.totalorder %s22, 0
      %s25 = sadd.s32 %s24, 1
      %s26 = scalar_select %p23, %s24, %s25
      %p29 = pneg %p23
      %p30 = scmp.eq.s32.totalorder %s14, 1
      %p31 = por %p29, %p30
      %p32 = scmp.ne.s32.totalorder %s24, %s27
      %p33 = scmp.eq.s32.totalorder %s14, 0
      %p34 = por %p32, %p33
      %p35 = scmp.ne.s32.totalorder %s24, %s27
      %p36 = scmp.eq.s32.totalorder %s19, 1
      %p37 = por %p35, %p36
      %p38 = scmp.ne.s32.totalorder %s27, %s28
      %p39 = scmp.eq.s32.totalorder %s19, 0
      %p40 = por %p38, %p39
      %p41 = scmp.ne.s32.totalorder %s27, %s28
      %p42 = scmp.eq.s32.totalorder %s20, 1
      %p43 = por %p41, %p42
      %p45 = scmp.ne.s32.totalorder %s28, %s44
      %p46 = scmp.eq.s32.totalorder %s20, 0
      %p47 = por %p45, %p46
      %s49 = sadd.s32 %s48, 1
      %p52 = scmp.eq.s32.totalorder %s14, 1
      %p53 = scmp.ne.s32.totalorder %s48, %s50
      %p54 = scmp.eq.s32.totalorder %s14, 0
      %p55 = por %p53, %p54
      %p56 = scmp.ne.s32.totalorder %s48, %s50
      %p57 = scmp.eq.s32.totalorder %s19, 1
      %p58 = por %p56, %p57
      %p59 = scmp.ne.s32.totalorder %s50, %s51
      %p60 = scmp.eq.s32.totalorder %s19, 0
      %p61 = por %p59, %p60
      %p62 = scmp.ne.s32.totalorder %s50, %s51
      %p63 = scmp.eq.s32.totalorder %s20, 1
      %p64 = por %p62, %p63
      %p66 = scmp.ne.s32.totalorder %s51, %s65
      %p67 = scmp.eq.s32.totalorder %s20, 0
      %p68 = por %p66, %p67
      %s70 = sadd.s32 %s69, 1
      %p73 = scmp.eq.s32.totalorder %s14, 1
      %p74 = scmp.ne.s32.totalorder %s69, %s71
      %p75 = scmp.eq.s32.totalorder %s14, 0
      %p76 = por %p74, %p75
      %p77 = scmp.ne.s32.totalorder %s69, %s71
      %p78 = scmp.eq.s32.totalorder %s19, 1
      %p79 = por %p77, %p78
      %p80 = scmp.ne.s32.totalorder %s71, %s72
      %p81 = scmp.eq.s32.totalorder %s19, 0
      %p82 = por %p80, %p81
      %p83 = scmp.ne.s32.totalorder %s71, %s72
      %p84 = scmp.eq.s32.totalorder %s20, 1
      %p85 = por %p83, %p84
      %p87 = scmp.ne.s32.totalorder %s72, %s86
      %p88 = scmp.eq.s32.totalorder %s20, 0
      %p89 = por %p87, %p88
      %s91 = sadd.s32 %s90, 1
      %p94 = scmp.eq.s32.totalorder %s14, 1
      %p95 = scmp.ne.s32.totalorder %s90, %s92
      %p96 = scmp.eq.s32.totalorder %s14, 0
      %p97 = por %p95, %p96
      %p98 = scmp.ne.s32.totalorder %s90, %s92
      %p99 = scmp.eq.s32.totalorder %s19, 1
      %p100 = por %p98, %p99
      %p101 = scmp.ne.s32.totalorder %s92, %s93
      %p102 = scmp.eq.s32.totalorder %s19, 0
      %p103 = por %p101, %p102
      %p104 = scmp.ne.s32.totalorder %s92, %s93
      %p105 = scmp.eq.s32.totalorder %s20, 1
      %p106 = por %p104, %p105
      %p108 = scmp.ne.s32.totalorder %s93, %s107
      %p109 = scmp.eq.s32.totalorder %s20, 0
      %p110 = por %p108, %p109
      %s112 = sadd.s32 %s111, 1
      %p115 = scmp.eq.s32.totalorder %s14, 1
      %p116 = scmp.ne.s32.totalorder %s111, %s113
      %p117 = scmp.eq.s32.totalorder %s14, 0
      %p118 = por %p116, %p117
      %p119 = scmp.ne.s32.totalorder %s111, %s113
      %p120 = scmp.eq.s32.totalorder %s19, 1
      %p121 = por %p119, %p120
      %p122 = scmp.ne.s32.totalorder %s113, %s114
      %p123 = scmp.eq.s32.totalorder %s19, 0
      %p124 = por %p122, %p123
      %p125 = scmp.ne.s32.totalorder %s113, %s114
      %p126 = scmp.eq.s32.totalorder %s20, 1
      %p127 = por %p125, %p126
      %p129 = scmp.ne.s32.totalorder %s114, %s128
      %p130 = scmp.eq.s32.totalorder %s20, 0
      %p131 = por %p129, %p130
      %s132 = ssub.s32 %s14, %s21
      %p133 = scmp.eq.s32.totalorder %s132, 0
      %s135 = sadd.s32 %s134, 1
      %s136 = scalar_select %p133, %s134, %s135
      %p139 = pneg %p133
      %p140 = scmp.eq.s32.totalorder %s14, 1
      %p141 = por %p139, %p140
      %p142 = scmp.ne.s32.totalorder %s134, %s137
      %p143 = scmp.eq.s32.totalorder %s14, 0
      %p144 = por %p142, %p143
      %p145 = scmp.ne.s32.totalorder %s134, %s137
      %p146 = scmp.eq.s32.totalorder %s19, 1
      %p147 = por %p145, %p146
      %p148 = scmp.ne.s32.totalorder %s137, %s138
      %p149 = scmp.eq.s32.totalorder %s19, 0
      %p150 = por %p148, %p149
      %p151 = scmp.ne.s32.totalorder %s137, %s138
      %p152 = scmp.eq.s32.totalorder %s20, 1
      %p153 = por %p151, %p152
      %p155 = scmp.ne.s32.totalorder %s138, %s154
      %p156 = scmp.eq.s32.totalorder %s20, 0
      %p157 = por %p155, %p156
      %p158 = scmp.le.s32.totalorder 1, %s14
      %p159 = scmp.lt.s32.totalorder %s14, 3
      %p160 = pnand %p158, %p159
      %p161 = pneg %p160
      // Predicated region
      $region9: #{tpu_custom_call.1} parent=5 // pred_check
        _
      $region10: #{tpu_custom_call.1} parent=5 // pred_check_branch
        %163 = sbr.rel (%p160) target = $region12
      $region11: #{tpu_custom_call.1} parent=5 // pred_region
        %s164 = ssub.s32 %s14, 1
        // Predicated region
        $region13: #{tpu_custom_call.1} parent=11 // pred_check
          %p165 = pneg %p61
        $region14: #{tpu_custom_call.1} parent=11 // pred_check_branch
          %167 = sbr.rel (%p165) target = $region16
        $region15: #{tpu_custom_call.1} parent=11 // pred_region
          _
        $region16: #{tpu_custom_call.1} parent=11 // pred_fallthru
          _
        // Predicated region
        $region17: #{tpu_custom_call.1} parent=11 // pred_check
          %p168 = pneg %p82
        $region18: #{tpu_custom_call.1} parent=11 // pred_check_branch
          %170 = sbr.rel (%p168) target = $region20
        $region19: #{tpu_custom_call.1} parent=11 // pred_region
          _
        $region20: #{tpu_custom_call.1} parent=11 // pred_fallthru
          _
        // Predicated region
        $region21: #{tpu_custom_call.1} parent=11 // pred_check
          %p171 = pneg %p103
        $region22: #{tpu_custom_call.1} parent=11 // pred_check_branch
          %173 = sbr.rel (%p171) target = $region24
        $region23: #{tpu_custom_call.1} parent=11 // pred_region
          _
        $region24: #{tpu_custom_call.1} parent=11 // pred_fallthru
          _
        // Predicated region
        $region25: #{tpu_custom_call.1} parent=11 // pred_check
          %p174 = pneg %p124
        $region26: #{tpu_custom_call.1} parent=11 // pred_check_branch
          %176 = sbr.rel (%p174) target = $region28
        $region27: #{tpu_custom_call.1} parent=11 // pred_region
          _
        $region28: #{tpu_custom_call.1} parent=11 // pred_fallthru
          _
      $region12: #{tpu_custom_call.1} parent=5 // pred_fallthru
        _
      %p177 = scmp.lt.s32.totalorder %s14, 2
      // Predicated region
      $region29: #{tpu_custom_call.1} parent=5 // pred_check
        %p178 = pneg %p177
      $region30: #{tpu_custom_call.1} parent=5 // pred_check_branch
        %180 = sbr.rel (%p178) target = $region32
      $region31: #{tpu_custom_call.1} parent=5 // pred_region
        // Predicated region
        $region33: #{tpu_custom_call.1} parent=31 // pred_check
          %p181 = pneg %p34
        $region34: #{tpu_custom_call.1} parent=31 // pred_check_branch
          %183 = sbr.rel (%p181) target = $region36
        $region35: #{tpu_custom_call.1} parent=31 // pred_region
          %p184 = scmp.lt.s32.totalorder %s14, 1
          %s185 = scalar_select %p184, %s14, 1
          %s186 = smul.addr %s185, 32
          %s187 = smul.addr %s186, 8
          %s188 = scalar_lea.vmem %s0, %s187
        $region36: #{tpu_custom_call.1} parent=31 // pred_fallthru
          _
      $region32: #{tpu_custom_call.1} parent=5 // pred_fallthru
        _
      %p189 = scmp.le.s32.totalorder 1, %s14
      %p190 = scmp.lt.s32.totalorder %s14, 3
      %p191 = pnand %p189, %p190
      %p192 = pneg %p191
      // Predicated region
      $region37: #{tpu_custom_call.1} parent=5 // pred_check
        _
      $region38: #{tpu_custom_call.1} parent=5 // pred_check_branch
        %194 = sbr.rel (%p191) target = $region40
      $region39: #{tpu_custom_call.1} parent=5 // pred_region
        %s195 = ssub.s32 %s14, 1
        %p196 = scmp.lt.s32.totalorder %s19, 1
        %s197 = scalar_select %p196, %s19, 1
        %s198 = smul.addr %s197, 32
        %s199 = smul.addr %s198, 8
        %s200 = scalar_lea.vmem %s0, %s199
        %p201 = pneg %p40
        %p202 = pneg %p37
        %p203 = pneg %p61
        %p204 = pneg %p58
        %p205 = pneg %p82
        %p206 = pneg %p79
        %p207 = pneg %p103
        %p208 = pneg %p100
        %p209 = pneg %p124
        %p210 = pneg %p121
        %p211 = pneg %p150
        %p212 = pneg %p147
        %s213 = sand.u32 %s137, 1
        %s214 = scalar_lea.sflag [#allocation3], %s213
        %s215 = sand.u32 %s137, 1
        %s216 = scalar_lea.vmem [#allocation2], %s215
        %p217 = scmp.lt.s32.totalorder %s19, 1
        %s218 = scalar_select %p217, %s19, 1
        %s219 = smul.addr %s218, 32
        %s220 = smul.addr %s219, 8
        %s221 = scalar_lea.vmem %s0, %s220
        %v222 = vld [vmem:[%s221] sm:$0xff]
        %v223 = vld [vmem:[%s221 + $0x8] sm:$0xff]
        %v224 = vld [vmem:[%s221 + $0x10] sm:$0xff]
        %v225 = vld [vmem:[%s221 + $0x18] sm:$0xff]
        %v226 = vld [vmem:[%s221 + $0x20] sm:$0xff]
        %v227 = vld [vmem:[%s221 + $0x28] sm:$0xff]
        %v228 = vld [vmem:[%s221 + $0x30] sm:$0xff]
        %v229 = vld [vmem:[%s221 + $0x38] sm:$0xff]
        %v230 = vld [vmem:[%s221 + $0x40] sm:$0xff]
        %v231 = vld [vmem:[%s221 + $0x48] sm:$0xff]
        %v232 = vld [vmem:[%s221 + $0x50] sm:$0xff]
        %v233 = vld [vmem:[%s221 + $0x58] sm:$0xff]
        %v234 = vld [vmem:[%s221 + $0x60] sm:$0xff]
        %v235 = vld [vmem:[%s221 + $0x68] sm:$0xff]
        %v236 = vld [vmem:[%s221 + $0x70] sm:$0xff]
        %v237 = vld [vmem:[%s221 + $0x78] sm:$0xff]
        %v238 = vld [vmem:[%s221 + $0x80] sm:$0xff]
        %v239 = vld [vmem:[%s221 + $0x88] sm:$0xff]
        %v240 = vld [vmem:[%s221 + $0x90] sm:$0xff]
        %v241 = vld [vmem:[%s221 + $0x98] sm:$0xff]
        %v242 = vld [vmem:[%s221 + $0xa0] sm:$0xff]
        %v243 = vld [vmem:[%s221 + $0xa8] sm:$0xff]
        %v244 = vld [vmem:[%s221 + $0xb0] sm:$0xff]
        %v245 = vld [vmem:[%s221 + $0xb8] sm:$0xff]
        %v246 = vld [vmem:[%s221 + $0xc0] sm:$0xff]
        %v247 = vld [vmem:[%s221 + $0xc8] sm:$0xff]
        %v248 = vld [vmem:[%s221 + $0xd0] sm:$0xff]
        %v249 = vld [vmem:[%s221 + $0xd8] sm:$0xff]
        %v250 = vld [vmem:[%s221 + $0xe0] sm:$0xff]
        %v251 = vld [vmem:[%s221 + $0xe8] sm:$0xff]
        %v252 = vld [vmem:[%s221 + $0xf0] sm:$0xff]
        %v253 = vld [vmem:[%s221 + $0xf8] sm:$0xff]
        %v254 = vld [vmem:[%s1] sm:$0xff]
        %v255 = vld [vmem:[%s1 + $0x8] sm:$0xff]
        %v256 = vld [vmem:[%s1 + $0x10] sm:$0xff]
        %v257 = vld [vmem:[%s1 + $0x18] sm:$0xff]
        %v258 = vld [vmem:[%s1 + $0x20] sm:$0xf]
        %v259 = vld [vmem:[%s2] sm:$0x1]
        %v261 = vlaneseq
        %v262 = vshrl.u32 %v261, 7
        %v263 = vsub.s32 0, %v262
        %v264 = vrot.slane %v259, %v263
        %vm266 = vcmask 293888
        %v268 = vsel %vm266, %v222, 0
        %v271 = vsel %vm266, %v223, 0
        %v274 = vsel %vm266, %v224, 0
        %v277 = vsel %vm266, %v225, 0
        %v280 = vsel %vm266, %v226, 0
        %v283 = vsel %vm266, %v227, 0
        %v286 = vsel %vm266, %v228, 0
        %v289 = vsel %vm266, %v229, 0
        %v292 = vsel %vm266, %v230, 0
        %v295 = vsel %vm266, %v231, 0
        %v298 = vsel %vm266, %v232, 0
        %v301 = vsel %vm266, %v233, 0
        %v304 = vsel %vm266, %v234, 0
        %v307 = vsel %vm266, %v235, 0
        %v310 = vsel %vm266, %v236, 0
        %v313 = vsel %vm266, %v237, 0
        %v316 = vsel %vm266, %v238, 0
        %v319 = vsel %vm266, %v239, 0
        %v322 = vsel %vm266, %v240, 0
        %v325 = vsel %vm266, %v241, 0
        %v328 = vsel %vm266, %v242, 0
        %v331 = vsel %vm266, %v243, 0
        %v334 = vsel %vm266, %v244, 0
        %v337 = vsel %vm266, %v245, 0
        %v340 = vsel %vm266, %v246, 0
        %v343 = vsel %vm266, %v247, 0
        %v346 = vsel %vm266, %v248, 0
        %v349 = vsel %vm266, %v249, 0
        %v352 = vsel %vm266, %v250, 0
        %v355 = vsel %vm266, %v251, 0
        %v358 = vsel %vm266, %v252, 0
        %v361 = vsel %vm266, %v253, 0
        %vm363 = vcmask 1043456
        %v365 = vsel %vm363, %v258, 0
        %367 = vmatprep.subr.mxu0 0.0
        %368 = vmatpush1.msra.mxu0 %v254
        %369 = vmatprep.subr.mxu0 0.0
        %370 = vmatpush1.msra.mxu0 %v255
        %371 = vmatprep.subr.mxu0 0.0
        %372 = vmatpush1.msra.mxu0 %v256
        %373 = vmatprep.subr.mxu0 0.0
        %374 = vmatpush1.msra.mxu0 %v257
        %375 = vmatprep.subr.mxu0 0.0
        %376 = vmatpush1.msra.mxu0 %v365
        %377 = vmatprep.subr.mxu0 0.0
        %378 = vmatpush1.msra.mxu0 0.0
        %379 = vmatprep.subr.mxu0 0.0
        %380 = vmatpush1.msra.mxu0 0.0
        %381 = vmatprep.subr.mxu0 0.0
        %382 = vmatpush1.msra.mxu0 0.0
        %383 = vmatprep.subr.mxu0 0.0
        %384 = vmatpush1.msra.mxu0 0.0
        %385 = vmatprep.subr.mxu0 0.0
        %386 = vmatpush1.msra.mxu0 0.0
        %387 = vmatprep.subr.mxu0 0.0
        %388 = vmatpush1.msra.mxu0 0.0
        %389 = vmatprep.subr.mxu0 0.0
        %390 = vmatpush1.msra.mxu0 0.0
        %391 = vmatprep.subr.mxu0 0.0
        %392 = vmatpush1.msra.mxu0 0.0
        %393 = vmatprep.subr.mxu0 0.0
        %394 = vmatpush1.msra.mxu0 0.0
        %395 = vmatprep.subr.mxu0 0.0
        %396 = vmatpush1.msra.mxu0 0.0
        %397 = vmatprep.subr.mxu0 0.0
        %398 = vmatpush1.msra.mxu0 0.0
        %399 = vmatprep.subr.mxu0 0.0
        %400 = vmatpush1.msra.mxu0 0.0
        %401 = vmatprep.subr.mxu0 0.0
        %402 = vmatpush1.msra.mxu0 0.0
        %403 = vmatprep.subr.mxu0 0.0
        %404 = vmatpush1.msra.mxu0 0.0
        %405 = vmatprep.subr.mxu0 0.0
        %406 = vmatpush1.msra.mxu0 0.0
        %407 = vmatprep.subr.mxu0 0.0
        %408 = vmatpush1.msra.mxu0 0.0
        %409 = vmatprep.subr.mxu0 0.0
        %410 = vmatpush1.msra.mxu0 0.0
        %411 = vmatprep.subr.mxu0 0.0
        %412 = vmatpush1.msra.mxu0 0.0
        %413 = vmatprep.subr.mxu0 0.0
        %414 = vmatpush1.msra.mxu0 0.0
        %415 = vmatprep.subr.mxu0 0.0
        %416 = vmatpush1.msra.mxu0 0.0
        %417 = vmatprep.subr.mxu0 0.0
        %418 = vmatpush1.msra.mxu0 0.0
        %419 = vmatprep.subr.mxu0 0.0
        %420 = vmatpush1.msra.mxu0 0.0
        %421 = vmatprep.subr.mxu0 0.0
        %422 = vmatpush1.msra.mxu0 0.0
        %423 = vmatprep.subr.mxu0 0.0
        %424 = vmatpush1.msra.mxu0 0.0
        %425 = vmatprep.subr.mxu0 0.0
        %426 = vmatpush1.msra.mxu0 0.0
        %427 = vmatprep.subr.mxu0 0.0
        %428 = vmatpush1.msra.mxu0 0.0
        %429 = vmatprep.subr.mxu0 0.0
        %430 = vmatpush1.msra.mxu0 0.0
        %431 = vmatprep.mubr.f32.mxu0 0.0
        %432 = vmatmul.mubr.f32.gmra.mrb[0].mxu0 %v268
        %v433 = vpop.f32.mrb[0].mxu0
        %v434 = vadd.f32 %v264, %v433
        %v435 = vpop.f32.mrb[0].mxu0
        %436 = vmatprep.mubr.f32.mxu0 0.0
        %437 = vmatmul.mubr.f32.gmra.mrb[0].mxu0 %v271
        %v438 = vpop.f32.mrb[0].mxu0
        %v439 = vadd.f32 %v264, %v438
        %v440 = vpop.f32.mrb[0].mxu0
        %441 = vmatprep.mubr.f32.mxu0 0.0
        %442 = vmatmul.mubr.f32.gmra.mrb[0].mxu0 %v274
        %v443 = vpop.f32.mrb[0].mxu0
        %v444 = vadd.f32 %v264, %v443
        %v445 = vpop.f32.mrb[0].mxu0
        %446 = vmatprep.mubr.f32.mxu0 0.0
        %447 = vmatmul.mubr.f32.gmra.mrb[0].mxu0 %v277
        %v448 = vpop.f32.mrb[0].mxu0
        %v449 = vadd.f32 %v264, %v448
        %v450 = vpop.f32.mrb[0].mxu0
        %451 = vmatprep.mubr.f32.mxu0 0.0
        %452 = vmatmul.mubr.f32.gmra.mrb[0].mxu0 %v280
        %v453 = vpop.f32.mrb[0].mxu0
        %v454 = vadd.f32 %v264, %v453
        %v455 = vpop.f32.mrb[0].mxu0
        %456 = vmatprep.mubr.f32.mxu0 0.0
        %457 = vmatmul.mubr.f32.gmra.mrb[0].mxu0 %v283
        %v458 = vpop.f32.mrb[0].mxu0
        %v459 = vadd.f32 %v264, %v458
        %v460 = vpop.f32.mrb[0].mxu0
        %461 = vmatprep.mubr.f32.mxu0 0.0
        %462 = vmatmul.mubr.f32.gmra.mrb[0].mxu0 %v286
        %v463 = vpop.f32.mrb[0].mxu0
        %v464 = vadd.f32 %v264, %v463
        %v465 = vpop.f32.mrb[0].mxu0
        %466 = vmatprep.mubr.f32.mxu0 0.0
        %467 = vmatmul.mubr.f32.gmra.mrb[0].mxu0 %v289
        %v468 = vpop.f32.mrb[0].mxu0
        %v469 = vadd.f32 %v264, %v468
        %v470 = vpop.f32.mrb[0].mxu0
        %471 = vmatprep.mubr.f32.mxu0 0.0
        %472 = vmatmul.mubr.f32.gmra.mrb[0].mxu0 %v292
        %v473 = vpop.f32.mrb[0].mxu0
        %v474 = vadd.f32 %v264, %v473
        %v475 = vpop.f32.mrb[0].mxu0
        %476 = vmatprep.mubr.f32.mxu0 0.0
        %477 = vmatmul.mubr.f32.gmra.mrb[0].mxu0 %v295
        %v478 = vpop.f32.mrb[0].mxu0
        %v479 = vadd.f32 %v264, %v478
        %v480 = vpop.f32.mrb[0].mxu0
        %481 = vmatprep.mubr.f32.mxu0 0.0
        %482 = vmatmul.mubr.f32.gmra.mrb[0].mxu0 %v298
        %v483 = vpop.f32.mrb[0].mxu0
        %v484 = vadd.f32 %v264, %v483
        %v485 = vpop.f32.mrb[0].mxu0
        %486 = vmatprep.mubr.f32.mxu0 0.0
        %487 = vmatmul.mubr.f32.gmra.mrb[0].mxu0 %v301
        %v488 = vpop.f32.mrb[0].mxu0
        %v489 = vadd.f32 %v264, %v488
        %v490 = vpop.f32.mrb[0].mxu0
        %491 = vmatprep.mubr.f32.mxu0 0.0
        %492 = vmatmul.mubr.f32.gmra.mrb[0].mxu0 %v304
        %v493 = vpop.f32.mrb[0].mxu0
        %v494 = vadd.f32 %v264, %v493
        %v495 = vpop.f32.mrb[0].mxu0
        %496 = vmatprep.mubr.f32.mxu0 0.0
        %497 = vmatmul.mubr.f32.gmra.mrb[0].mxu0 %v307
        %v498 = vpop.f32.mrb[0].mxu0
        %v499 = vadd.f32 %v264, %v498
        %v500 = vpop.f32.mrb[0].mxu0
        %501 = vmatprep.mubr.f32.mxu0 0.0
        %502 = vmatmul.mubr.f32.gmra.mrb[0].mxu0 %v310
        %v503 = vpop.f32.mrb[0].mxu0
        %v504 = vadd.f32 %v264, %v503
        %v505 = vpop.f32.mrb[0].mxu0
        %506 = vmatprep.mubr.f32.mxu0 0.0
        %507 = vmatmul.mubr.f32.gmra.mrb[0].mxu0 %v313
        %v508 = vpop.f32.mrb[0].mxu0
        %v509 = vadd.f32 %v264, %v508
        %v510 = vpop.f32.mrb[0].mxu0
        %511 = vmatprep.mubr.f32.mxu0 0.0
        %512 = vmatmul.mubr.f32.gmra.mrb[0].mxu0 %v316
        %v513 = vpop.f32.mrb[0].mxu0
        %v514 = vadd.f32 %v264, %v513
        %v515 = vpop.f32.mrb[0].mxu0
        %516 = vmatprep.mubr.f32.mxu0 0.0
        %517 = vmatmul.mubr.f32.gmra.mrb[0].mxu0 %v319
        %v518 = vpop.f32.mrb[0].mxu0
        %v519 = vadd.f32 %v264, %v518
        %v520 = vpop.f32.mrb[0].mxu0
        %521 = vmatprep.mubr.f32.mxu0 0.0
        %522 = vmatmul.mubr.f32.gmra.mrb[0].mxu0 %v322
        %v523 = vpop.f32.mrb[0].mxu0
        %v524 = vadd.f32 %v264, %v523
        %v525 = vpop.f32.mrb[0].mxu0
        %526 = vmatprep.mubr.f32.mxu0 0.0
        %527 = vmatmul.mubr.f32.gmra.mrb[0].mxu0 %v325
        %v528 = vpop.f32.mrb[0].mxu0
        %v529 = vadd.f32 %v264, %v528
        %v530 = vpop.f32.mrb[0].mxu0
        %531 = vmatprep.mubr.f32.mxu0 0.0
        %532 = vmatmul.mubr.f32.gmra.mrb[0].mxu0 %v328
        %v533 = vpop.f32.mrb[0].mxu0
        %v534 = vadd.f32 %v264, %v533
        %v535 = vpop.f32.mrb[0].mxu0
        %536 = vmatprep.mubr.f32.mxu0 0.0
        %537 = vmatmul.mubr.f32.gmra.mrb[0].mxu0 %v331
        %v538 = vpop.f32.mrb[0].mxu0
        %v539 = vadd.f32 %v264, %v538
        %v540 = vpop.f32.mrb[0].mxu0
        %541 = vmatprep.mubr.f32.mxu0 0.0
        %542 = vmatmul.mubr.f32.gmra.mrb[0].mxu0 %v334
        %v543 = vpop.f32.mrb[0].mxu0
        %v544 = vadd.f32 %v264, %v543
        %v545 = vpop.f32.mrb[0].mxu0
        %546 = vmatprep.mubr.f32.mxu0 0.0
        %547 = vmatmul.mubr.f32.gmra.mrb[0].mxu0 %v337
        %v548 = vpop.f32.mrb[0].mxu0
        %v549 = vadd.f32 %v264, %v548
        %v550 = vpop.f32.mrb[0].mxu0
        %551 = vmatprep.mubr.f32.mxu0 0.0
        %552 = vmatmul.mubr.f32.gmra.mrb[0].mxu0 %v340
        %v553 = vpop.f32.mrb[0].mxu0
        %v554 = vadd.f32 %v264, %v553
        %v555 = vpop.f32.mrb[0].mxu0
        %556 = vmatprep.mubr.f32.mxu0 0.0
        %557 = vmatmul.mubr.f32.gmra.mrb[0].mxu0 %v343
        %v558 = vpop.f32.mrb[0].mxu0
        %v559 = vadd.f32 %v264, %v558
        %v560 = vpop.f32.mrb[0].mxu0
        %561 = vmatprep.mubr.f32.mxu0 0.0
        %562 = vmatmul.mubr.f32.gmra.mrb[0].mxu0 %v346
        %v563 = vpop.f32.mrb[0].mxu0
        %v564 = vadd.f32 %v264, %v563
        %v565 = vpop.f32.mrb[0].mxu0
        %566 = vmatprep.mubr.f32.mxu0 0.0
        %567 = vmatmul.mubr.f32.gmra.mrb[0].mxu0 %v349
        %v568 = vpop.f32.mrb[0].mxu0
        %v569 = vadd.f32 %v264, %v568
        %v570 = vpop.f32.mrb[0].mxu0
        %571 = vmatprep.mubr.f32.mxu0 0.0
        %572 = vmatmul.mubr.f32.gmra.mrb[0].mxu0 %v352
        %v573 = vpop.f32.mrb[0].mxu0
        %v574 = vadd.f32 %v264, %v573
        %v575 = vpop.f32.mrb[0].mxu0
        %576 = vmatprep.mubr.f32.mxu0 0.0
        %577 = vmatmul.mubr.f32.gmra.mrb[0].mxu0 %v355
        %v578 = vpop.f32.mrb[0].mxu0
        %v579 = vadd.f32 %v264, %v578
        %v580 = vpop.f32.mrb[0].mxu0
        %581 = vmatprep.mubr.f32.mxu0 0.0
        %582 = vmatmul.mubr.f32.gmra.mrb[0].mxu0 %v358
        %v583 = vpop.f32.mrb[0].mxu0
        %v584 = vadd.f32 %v264, %v583
        %v585 = vpop.f32.mrb[0].mxu0
        %586 = vmatprep.mubr.f32.mxu0 0.0
        %587 = vmatmul.mubr.f32.gmra.mrb[0].mxu0 %v361
        %v588 = vpop.f32.mrb[0].mxu0
        %v589 = vadd.f32 %v264, %v588
        %v590 = vpop.f32.mrb[0].mxu0
        %591 = vdwg.mxu0
        %v592 = vmax.f32 %v434, 0.0
        %v593 = vmax.f32 %v439, 0.0
        %v594 = vmax.f32 %v444, 0.0
        %v595 = vmax.f32 %v449, 0.0
        %v596 = vmax.f32 %v454, 0.0
        %v597 = vmax.f32 %v459, 0.0
        %v598 = vmax.f32 %v464, 0.0
        %v599 = vmax.f32 %v469, 0.0
        %v600 = vmax.f32 %v474, 0.0
        %v601 = vmax.f32 %v479, 0.0
        %v602 = vmax.f32 %v484, 0.0
        %v603 = vmax.f32 %v489, 0.0
        %v604 = vmax.f32 %v494, 0.0
        %v605 = vmax.f32 %v499, 0.0
        %v606 = vmax.f32 %v504, 0.0
        %v607 = vmax.f32 %v509, 0.0
        %v608 = vmax.f32 %v514, 0.0
        %v609 = vmax.f32 %v519, 0.0
        %v610 = vmax.f32 %v524, 0.0
        %v611 = vmax.f32 %v529, 0.0
        %v612 = vmax.f32 %v534, 0.0
        %v613 = vmax.f32 %v539, 0.0
        %v614 = vmax.f32 %v544, 0.0
        %v615 = vmax.f32 %v549, 0.0
        %v616 = vmax.f32 %v554, 0.0
        %v617 = vmax.f32 %v559, 0.0
        %v618 = vmax.f32 %v564, 0.0
        %v619 = vmax.f32 %v569, 0.0
        %v620 = vmax.f32 %v574, 0.0
        %v621 = vmax.f32 %v579, 0.0
        %v622 = vmax.f32 %v584, 0.0
        %v623 = vmax.f32 %v589, 0.0
        %v624 = vadd.f32 %v592, %v593
        %v625 = vadd.f32 %v624, %v594
        %v626 = vadd.f32 %v625, %v595
        %v627 = vadd.f32 %v626, %v596
        %v628 = vadd.f32 %v627, %v597
        %v629 = vadd.f32 %v628, %v598
        %v630 = vadd.f32 %v629, %v599
        %v631 = vadd.f32 %v630, %v600
        %v632 = vadd.f32 %v631, %v601
        %v633 = vadd.f32 %v632, %v602
        %v634 = vadd.f32 %v633, %v603
        %v635 = vadd.f32 %v634, %v604
        %v636 = vadd.f32 %v635, %v605
        %v637 = vadd.f32 %v636, %v606
        %v638 = vadd.f32 %v637, %v607
        %v639 = vadd.f32 %v638, %v608
        %v640 = vadd.f32 %v639, %v609
        %v641 = vadd.f32 %v640, %v610
        %v642 = vadd.f32 %v641, %v611
        %v643 = vadd.f32 %v642, %v612
        %v644 = vadd.f32 %v643, %v613
        %v645 = vadd.f32 %v644, %v614
        %v646 = vadd.f32 %v645, %v615
        %v647 = vadd.f32 %v646, %v616
        %v648 = vadd.f32 %v647, %v617
        %v649 = vadd.f32 %v648, %v618
        %v650 = vadd.f32 %v649, %v619
        %v651 = vadd.f32 %v650, %v620
        %v652 = vadd.f32 %v651, %v621
        %v653 = vadd.f32 %v652, %v622
        %v654 = vadd.f32 %v653, %v623
        %v655 = vrot.slane %v654, 4
        %v656 = vadd.f32 %v654, %v655
        %v657 = vrot.slane %v656, 2
        %v658 = vadd.f32 %v656, %v657
        %v659 = vrot.slane %v658, 1
        %v660 = vadd.f32 %v658, %v659
        %v661 = vld [vmem:[%s3] sm:$0xff]
        %v662 = vld [vmem:[%s3 + $0x8] sm:$0xff]
        %v663 = vld [vmem:[%s3 + $0x10] sm:$0xff]
        %v664 = vld [vmem:[%s3 + $0x18] sm:$0xff]
        %v665 = vld [vmem:[%s3 + $0x20] sm:$0xff]
        %v666 = vld [vmem:[%s3 + $0x28] sm:$0xff]
        %v667 = vld [vmem:[%s3 + $0x30] sm:$0xff]
        %v668 = vld [vmem:[%s3 + $0x38] sm:$0xff]
        %v669 = vld [vmem:[%s3 + $0x40] sm:$0xff]
        %v670 = vld [vmem:[%s3 + $0x48] sm:$0xff]
        %v671 = vld [vmem:[%s3 + $0x50] sm:$0xff]
        %v672 = vld [vmem:[%s3 + $0x58] sm:$0xff]
        %v673 = vld [vmem:[%s3 + $0x60] sm:$0xff]
        %v674 = vld [vmem:[%s3 + $0x68] sm:$0xff]
        %v675 = vld [vmem:[%s3 + $0x70] sm:$0xff]
        %v676 = vld [vmem:[%s3 + $0x78] sm:$0xff]
        %v677 = vld [vmem:[%s4] sm:$0x1]
        %678 = vmatprep.subr.mxu0 0.0
        %679 = vmatpush1.msra.mxu0 %v661
        %680 = vmatprep.subr.mxu0 0.0
        %681 = vmatpush1.msra.mxu0 %v662
        %682 = vmatprep.subr.mxu0 0.0
        %683 = vmatpush1.msra.mxu0 %v663
        %684 = vmatprep.subr.mxu0 0.0
        %685 = vmatpush1.msra.mxu0 %v664
        %686 = vmatprep.subr.mxu0 0.0
        %687 = vmatpush1.msra.mxu0 %v665
        %688 = vmatprep.subr.mxu0 0.0
        %689 = vmatpush1.msra.mxu0 %v666
        %690 = vmatprep.subr.mxu0 0.0
        %691 = vmatpush1.msra.mxu0 %v667
        %692 = vmatprep.subr.mxu0 0.0
        %693 = vmatpush1.msra.mxu0 %v668
        %694 = vmatprep.subr.mxu0 0.0
        %695 = vmatpush1.msra.mxu0 %v669
        %696 = vmatprep.subr.mxu0 0.0
        %697 = vmatpush1.msra.mxu0 %v670
        %698 = vmatprep.subr.mxu0 0.0
        %699 = vmatpush1.msra.mxu0 %v671
        %700 = vmatprep.subr.mxu0 0.0
        %701 = vmatpush1.msra.mxu0 %v672
        %702 = vmatprep.subr.mxu0 0.0
        %703 = vmatpush1.msra.mxu0 %v673
        %704 = vmatprep.subr.mxu0 0.0
        %705 = vmatpush1.msra.mxu0 %v674
        %706 = vmatprep.subr.mxu0 0.0
        %707 = vmatpush1.msra.mxu0 %v675
        %708 = vmatprep.subr.mxu0 0.0
        %709 = vmatpush1.msra.mxu0 %v676
        %710 = vmatprep.subr.mxu0 0.0
        %711 = vmatpush1.msra.mxu0 0.0
        %712 = vmatprep.subr.mxu0 0.0
        %713 = vmatpush1.msra.mxu0 0.0
        %714 = vmatprep.subr.mxu0 0.0
        %715 = vmatpush1.msra.mxu0 0.0
        %716 = vmatprep.subr.mxu0 0.0
        %717 = vmatpush1.msra.mxu0 0.0
        %718 = vmatprep.subr.mxu0 0.0
        %719 = vmatpush1.msra.mxu0 0.0
        %720 = vmatprep.subr.mxu0 0.0
        %721 = vmatpush1.msra.mxu0 0.0
        %722 = vmatprep.subr.mxu0 0.0
        %723 = vmatpush1.msra.mxu0 0.0
        %724 = vmatprep.subr.mxu0 0.0
        %725 = vmatpush1.msra.mxu0 0.0
        %726 = vmatprep.subr.mxu0 0.0
        %727 = vmatpush1.msra.mxu0 0.0
        %728 = vmatprep.subr.mxu0 0.0
        %729 = vmatpush1.msra.mxu0 0.0
        %730 = vmatprep.subr.mxu0 0.0
        %731 = vmatpush1.msra.mxu0 0.0
        %732 = vmatprep.subr.mxu0 0.0
        %733 = vmatpush1.msra.mxu0 0.0
        %734 = vmatprep.subr.mxu0 0.0
        %735 = vmatpush1.msra.mxu0 0.0
        %736 = vmatprep.subr.mxu0 0.0
        %737 = vmatpush1.msra.mxu0 0.0
        %738 = vmatprep.subr.mxu0 0.0
        %739 = vmatpush1.msra.mxu0 0.0
        %740 = vmatprep.subr.mxu0 0.0
        %741 = vmatpush1.msra.mxu0 0.0
        %742 = vmatprep.mubr.f32.mxu0 0.0
        %743 = vmatmul.mubr.f32.gmra.mrb[0].mxu0 %v660
        %v744 = vpop.f32.mrb[0].mxu0
        %v745 = vadd.f32 %v677, %v744
        %v746 = vpop.f32.mrb[0].mxu0
        %747 = vdwg.mxu0
        %748 = vst [vmem:[%s216] sm:$0x1] %v745
        %s749 = sand.u32 %s137, 1
        %s750 = scalar_lea.sflag [#allocation3], %s749
        %s751 = sand.u32 %s137, 1
        %s752 = scalar_lea.vmem [#allocation2], %s751
        // Predicated region
        $region41: #{tpu_custom_call.1} parent=39 // pred_check
          %p753 = pneg %p147
        $region42: #{tpu_custom_call.1} parent=39 // pred_check_branch
          %755 = sbr.rel (%p753) target = $region44
        $region43: #{tpu_custom_call.1} parent=39 // pred_region
          %s757 = ssub.s32 16, 16
          %758 = vsyncadd %s750, %s757
          %s759 = smul.addr %s19, 16
          %s760 = scalar_lea.hbm %s5, %s759
          %s762 = sshll.u32 %s752, 4
          %s763 = int_to_ptr.vmem [resolvable:$true] %s762
          %765 = dma.vmem_to_hbm [thread:$0]  %s763, 16, %s760, %s750
        $region44: #{tpu_custom_call.1} parent=39 // pred_fallthru
          _
      $region40: #{tpu_custom_call.1} parent=5 // pred_fallthru
        _
      %p766 = scmp.le.s32.totalorder 2, %s14
      // Predicated region
      $region45: #{tpu_custom_call.1} parent=5 // pred_check
        %p767 = pneg %p766
      $region46: #{tpu_custom_call.1} parent=5 // pred_check_branch
        %769 = sbr.rel (%p767) target = $region48
      $region47: #{tpu_custom_call.1} parent=5 // pred_region
        %s770 = ssub.s32 %s14, 2
        // Predicated region
        $region49: #{tpu_custom_call.1} parent=47 // pred_check
          %p771 = pneg %p153
        $region50: #{tpu_custom_call.1} parent=47 // pred_check_branch
          %773 = sbr.rel (%p771) target = $region52
        $region51: #{tpu_custom_call.1} parent=47 // pred_region
          %s774 = sand.u32 %s138, 1
          %s775 = scalar_lea.sflag [#allocation3], %s774
          %s776 = sand.u32 %s138, 1
          %s777 = scalar_lea.vmem [#allocation2], %s776
          %778 = dma.done %s775, 16
        $region52: #{tpu_custom_call.1} parent=47 // pred_fallthru
          _
      $region48: #{tpu_custom_call.1} parent=5 // pred_fallthru
        _
    $region6: #{tpu_custom_call.1} parent=1 // loop_footer
      %s18 = sadd.s32 1, %s14
    $region7: #{tpu_custom_call.1} parent=1 // loop_footer_branch
      %13 = sbr.rel target = $region3
    $region8: #{tpu_custom_call.1} parent=1 // loop_exit
      _
    %779 = vsyncpa [#allocation3], 1
    %s780 = scalar_lea.sflag [#allocation3], 1
    %781 = vsyncpa %s780, 1

</llo_original>
